<compile_context>
chip_gen: v7x
topology: tpu7x:2x2x1
jax: 0.10.0
libtpu: 0.0.40
codegen_flags: <defaults>
</compile_context>

<pallas_src>
import numpy as np
import jax
import jax.numpy as jnp
from jax.experimental import pallas as pl
from jax.experimental.pallas import tpu as pltpu


def make_fourlayer_kernel(n_in, n_wid, n_out, beta=0.1, w_sig=1.0):
    """Builds the Pallas kernel body with NTK scaling constants baked in."""
    s1 = float(w_sig / np.sqrt(n_in))
    s2 = float(w_sig / np.sqrt(n_wid))
    s3 = float(w_sig / np.sqrt(n_wid))
    s4 = float(w_sig / np.sqrt(n_wid))

    def kernel(xT_ref, w1_ref, b1_ref, w2_ref, b2_ref,
               w3_ref, b3_ref, w4t_ref, b4_ref, o_ref):
        # xT_ref: (n_in, TILE_B) f32; w1: (n_wid, n_in) f32; w2/w3: (n_wid, n_wid)
        # bf16; w4t: (n_wid, n_out) f32; bN: (out, 1) f32; o_ref: (n_out, TILE_B).
        xT = xT_ref[...]

        # ---- fc1: degenerate K = n_in (= 2) contraction as rank-1 VPU broadcast
        #      updates (keeps it off the MXU entirely). NTK scale applied to the
        #      activation-sized result, never to the resident weights.
        z = w1_ref[:, 0:1] * xT[0:1, :]
        for i in range(1, n_in):
            z = z + w1_ref[:, i:i + 1] * xT[i:i + 1, :]
        h = jnp.maximum(s1 * z + beta * b1_ref[...], 0.0)

        # ---- fc2 / fc3: bf16-operand MXU matmuls, f32 accumulation; epilogue f32.
        z = jnp.dot(w2_ref[...], h.astype(jnp.bfloat16),
                    preferred_element_type=jnp.float32)
        h = jnp.maximum(s2 * z + beta * b2_ref[...], 0.0)

        z = jnp.dot(w3_ref[...], h.astype(jnp.bfloat16),
                    preferred_element_type=jnp.float32)
        h = jnp.maximum(s3 * z + beta * b3_ref[...], 0.0)

        # ---- fc4: n_out == 1 -> elementwise multiply + sublane reduction; the
        #      output stays lane-dense (batch on the lane axis).
        if n_out == 1:
            y = s4 * jnp.sum(w4t_ref[...] * h, axis=0, keepdims=True)
        else:
            y = s4 * jax.lax.dot_general(
                w4t_ref[...], h, (((0,), (0,)), ((), ())),
                preferred_element_type=jnp.float32)
        o_ref[...] = y + beta * b4_ref[...]

    return kernel


def _pick_tile_b(B, max_tile=8192):
    """Pick a lane-aligned batch tile: grid=(1,) on single-TC chips, grid=(2,)
    on dual-TC v7x when the batch is big enough to split."""
    try:
        two_tc = "v7" in jax.devices()[0].device_kind.lower()
    except Exception:  # pragma: no cover - device query is best-effort
        two_tc = False
    B_pad1 = pl.cdiv(B, 128) * 128
    if two_tc and B_pad1 >= 256:
        tile_b = pl.cdiv(B_pad1, 2 * 128) * 128     # two tiles, one per TC
    else:
        tile_b = B_pad1                              # single tile -> grid=(1,)
    return max(128, min(max_tile, tile_b))


def four_layers_net(x, params, n_wid, n_out=1, beta=0.1, w_sig=1.0, tile_b=None):
    """params: w1..w4 in PyTorch (out, in) layout, b1..b4 as (out,)."""
    B, n_in = x.shape

    if tile_b is None:
        tile_b = _pick_tile_b(B)
    tile_b = max(128, (tile_b // 128) * 128)
    B_pad = pl.cdiv(B, tile_b) * tile_b
    if B_pad != B:
        x = jnp.pad(x, ((0, B_pad - B), (0, 0)))
    xT = jnp.transpose(x).astype(jnp.float32)        # (n_in, B_pad): batch on lanes

    # Glue: weights stay in (out, in); fc2/fc3 weights pre-cast to bf16 (MXU-native,
    # halves their resident VMEM + DMA); fc4 weight passed as a column for the
    # sublane reduction; biases as (out, 1) columns for lane-broadcast.
    w1 = params["w1"].astype(jnp.float32)
    w2 = params["w2"].astype(jnp.bfloat16)
    w3 = params["w3"].astype(jnp.bfloat16)
    w4t = jnp.transpose(params["w4"]).astype(jnp.float32)   # (n_wid, n_out)
    b1 = params["b1"].reshape(n_wid, 1).astype(jnp.float32)
    b2 = params["b2"].reshape(n_wid, 1).astype(jnp.float32)
    b3 = params["b3"].reshape(n_wid, 1).astype(jnp.float32)
    b4 = params["b4"].reshape(n_out, 1).astype(jnp.float32)

    kernel = make_fourlayer_kernel(n_in, n_wid, n_out, beta=beta, w_sig=w_sig)

    grid = (B_pad // tile_b,)
    resident = lambda i: (0, 0)          # weights/biases: same block every step

    flops = 2 * B_pad * (n_in * n_wid + 2 * n_wid * n_wid + n_wid * n_out)
    bytes_accessed = (4 * (xT.size + w1.size + w4t.size
                           + b1.size + b2.size + b3.size + b4.size
                           + n_out * B_pad)
                      + 2 * (w2.size + w3.size))

    outT = pl.pallas_call(
        kernel,
        out_shape=jax.ShapeDtypeStruct((n_out, B_pad), jnp.float32),
        grid=grid,
        in_specs=[
            pl.BlockSpec((n_in, tile_b), lambda i: (0, i)),   # x tile (streamed)
            pl.BlockSpec((n_wid, n_in), resident),            # w1 (f32)
            pl.BlockSpec((n_wid, 1), resident),               # b1
            pl.BlockSpec((n_wid, n_wid), resident),           # w2 (bf16)
            pl.BlockSpec((n_wid, 1), resident),               # b2
            pl.BlockSpec((n_wid, n_wid), resident),           # w3 (bf16)
            pl.BlockSpec((n_wid, 1), resident),               # b3
            pl.BlockSpec((n_wid, n_out), resident),           # w4^T (f32)
            pl.BlockSpec((n_out, 1), resident),               # b4
        ],
        out_specs=pl.BlockSpec((n_out, tile_b), lambda i: (0, i)),
        compiler_params=pltpu.CompilerParams(
            dimension_semantics=("parallel",),                # 2-TC sharding on v7x
            vmem_limit_bytes=32 * 1024 * 1024),               # headroom for 8K tiles
        cost_estimate=pl.CostEstimate(
            flops=flops, transcendentals=0, bytes_accessed=bytes_accessed),
    )(xT, w1, b1, w2, b2, w3, b3, w4t, b4)

    return jnp.transpose(outT)[:B]                   # back to (B, n_out)


def reference_forward(x, params, n_wid, beta=0.1, w_sig=1.0):
    """Pure-JAX f32 reference matching the PyTorch module semantics."""
    def lin(h, w, b, fan_in):
        return h @ (w_sig * w / np.sqrt(fan_in)).T + beta * b

    h = jax.nn.relu(lin(x, params["w1"], params["b1"], x.shape[1]))
    h = jax.nn.relu(lin(h, params["w2"], params["b2"], n_wid))
    h = jax.nn.relu(lin(h, params["w3"], params["b3"], n_wid))
    return lin(h, params["w4"], params["b4"], n_wid)


if __name__ == "__main__":
    # Shapes implied by the module: in_features=2 (fc1), hidden n_wid, out=1.
    B = 512
    n_in = 2
    n_wid = 32
    n_out = 1
    beta = 0.1
    w_sig = 1.0

    key = jax.random.PRNGKey(0)
    keys = jax.random.split(key, 9)

    # reset_parameters(): weights ~ N(0,1), biases ~ N(0,1)  (PyTorch (out,in) layout)
    params = {
        "w1": jax.random.normal(keys[0], (n_wid, n_in), jnp.float32),
        "b1": jax.random.normal(keys[1], (n_wid,), jnp.float32),
        "w2": jax.random.normal(keys[2], (n_wid, n_wid), jnp.float32),
        "b2": jax.random.normal(keys[3], (n_wid,), jnp.float32),
        "w3": jax.random.normal(keys[4], (n_wid, n_wid), jnp.float32),
        "b3": jax.random.normal(keys[5], (n_wid,), jnp.float32),
        "w4": jax.random.normal(keys[6], (n_out, n_wid), jnp.float32),
        "b4": jax.random.normal(keys[7], (n_out,), jnp.float32),
    }

    x = jax.random.normal(keys[8], (B, n_in), jnp.float32)

    out = four_layers_net(x, params, n_wid, n_out=n_out, beta=beta, w_sig=w_sig)
    out = jax.block_until_ready(out)

    ref = reference_forward(x, params, n_wid, beta=beta, w_sig=w_sig)
    assert out.shape == (B, n_out)
    assert np.allclose(np.asarray(out), np.asarray(ref), rtol=2e-2, atol=2e-2), (
        "mismatch vs reference")

    print("KERNEL_OK")
</pallas_src>

<mosaic_0001>
module attributes {stable_mosaic.version = 11 : i64} {
  func.func @kernel(%arg0: i32, %arg1: memref<2x512xf32, #tpu.memory_space<vmem>>, %arg2: memref<32x2xf32, #tpu.memory_space<vmem>>, %arg3: memref<32x1xf32, #tpu.memory_space<vmem>>, %arg4: memref<32x32xbf16, #tpu.memory_space<vmem>>, %arg5: memref<32x1xf32, #tpu.memory_space<vmem>>, %arg6: memref<32x32xbf16, #tpu.memory_space<vmem>>, %arg7: memref<32x1xf32, #tpu.memory_space<vmem>>, %arg8: memref<32x1xf32, #tpu.memory_space<vmem>>, %arg9: memref<1x1xf32, #tpu.memory_space<vmem>>, %arg10: memref<1x512xf32, #tpu.memory_space<vmem>>) attributes {dimension_semantics = [#tpu.dimension_semantics<parallel>], iteration_bounds = array<i64: 1>, scalar_prefetch = 0 : i64, scratch_operands = 0 : i64, tpu.core_type = #tpu.core_type<tc>, window_params = [{transform_indices = @transform_0, window_bounds = array<i64: 2, 512>}, {pipeline_mode = #tpu.pipeline_mode<synchronous>, transform_indices = @transform_1, window_bounds = array<i64: 32, 2>}, {pipeline_mode = #tpu.pipeline_mode<synchronous>, transform_indices = @transform_2, window_bounds = array<i64: 32, 1>}, {pipeline_mode = #tpu.pipeline_mode<synchronous>, transform_indices = @transform_3, window_bounds = array<i64: 32, 32>}, {pipeline_mode = #tpu.pipeline_mode<synchronous>, transform_indices = @transform_4, window_bounds = array<i64: 32, 1>}, {pipeline_mode = #tpu.pipeline_mode<synchronous>, transform_indices = @transform_5, window_bounds = array<i64: 32, 32>}, {pipeline_mode = #tpu.pipeline_mode<synchronous>, transform_indices = @transform_6, window_bounds = array<i64: 32, 1>}, {pipeline_mode = #tpu.pipeline_mode<synchronous>, transform_indices = @transform_7, window_bounds = array<i64: 32, 1>}, {pipeline_mode = #tpu.pipeline_mode<synchronous>, transform_indices = @transform_8, window_bounds = array<i64: 1, 1>}, {transform_indices = @transform_9, window_bounds = array<i64: 1, 512>}]} {
    %c0 = arith.constant 0 : index
    %c0_0 = arith.constant 0 : index
    %0 = vector.load %arg1[%c0, %c0_0] : memref<2x512xf32, #tpu.memory_space<vmem>>, vector<2x512xf32>
    %c0_1 = arith.constant 0 : index
    %c0_2 = arith.constant 0 : index
    %1 = vector.load %arg2[%c0_1, %c0_2] : memref<32x2xf32, #tpu.memory_space<vmem>>, vector<32x1xf32>
    %2 = vector.extract_strided_slice %0 {offsets = [0, 0], sizes = [1, 512], strides = [1, 1]} : vector<2x512xf32> to vector<1x512xf32>
    %3 = vector.broadcast %1 : vector<32x1xf32> to vector<32x512xf32>
    %4 = vector.broadcast %2 : vector<1x512xf32> to vector<32x512xf32>
    %5 = arith.mulf %3, %4 : vector<32x512xf32>
    %c0_3 = arith.constant 0 : index
    %c1 = arith.constant 1 : index
    %6 = vector.load %arg2[%c0_3, %c1] : memref<32x2xf32, #tpu.memory_space<vmem>>, vector<32x1xf32>
    %7 = vector.extract_strided_slice %0 {offsets = [1, 0], sizes = [1, 512], strides = [1, 1]} : vector<2x512xf32> to vector<1x512xf32>
    %8 = vector.broadcast %6 : vector<32x1xf32> to vector<32x512xf32>
    %9 = vector.broadcast %7 : vector<1x512xf32> to vector<32x512xf32>
    %10 = arith.mulf %8, %9 : vector<32x512xf32>
    %11 = arith.addf %5, %10 : vector<32x512xf32>
    %cst = arith.constant 0.707106769 : f32
    %12 = vector.broadcast %cst : f32 to vector<32x512xf32>
    %13 = arith.mulf %12, %11 : vector<32x512xf32>
    %c0_4 = arith.constant 0 : index
    %c0_5 = arith.constant 0 : index
    %14 = vector.load %arg3[%c0_4, %c0_5] : memref<32x1xf32, #tpu.memory_space<vmem>>, vector<32x1xf32>
    %cst_6 = arith.constant 1.000000e-01 : f32
    %15 = vector.broadcast %cst_6 : f32 to vector<32x1xf32>
    %16 = arith.mulf %15, %14 : vector<32x1xf32>
    %17 = vector.broadcast %16 : vector<32x1xf32> to vector<32x512xf32>
    %18 = arith.addf %13, %17 : vector<32x512xf32>
    %cst_7 = arith.constant 0.000000e+00 : f32
    %19 = vector.broadcast %cst_7 : f32 to vector<32x512xf32>
    %20 = arith.maximumf %18, %19 : vector<32x512xf32>
    %c0_8 = arith.constant 0 : index
    %c0_9 = arith.constant 0 : index
    %21 = vector.load %arg4[%c0_8, %c0_9] : memref<32x32xbf16, #tpu.memory_space<vmem>>, vector<32x32xbf16>
    %22 = arith.truncf %20 : vector<32x512xf32> to vector<32x512xbf16>
    %cst_10 = arith.constant dense<0.000000e+00> : vector<32x512xf32>
    %23 = tpu.matmul %21, %22, %cst_10 {dimension_numbers = #tpu.dot_dimension_numbers<[1], [0], [0], [1], [0, 0, 1, 1], [], []>} : vector<32x32xbf16>, vector<32x512xbf16>, vector<32x512xf32> -> vector<32x512xf32>
    %cst_11 = arith.constant 0.176776692 : f32
    %24 = vector.broadcast %cst_11 : f32 to vector<32x512xf32>
    %25 = arith.mulf %24, %23 : vector<32x512xf32>
    %c0_12 = arith.constant 0 : index
    %c0_13 = arith.constant 0 : index
    %26 = vector.load %arg5[%c0_12, %c0_13] : memref<32x1xf32, #tpu.memory_space<vmem>>, vector<32x1xf32>
    %cst_14 = arith.constant 1.000000e-01 : f32
    %27 = vector.broadcast %cst_14 : f32 to vector<32x1xf32>
    %28 = arith.mulf %27, %26 : vector<32x1xf32>
    %29 = vector.broadcast %28 : vector<32x1xf32> to vector<32x512xf32>
    %30 = arith.addf %25, %29 : vector<32x512xf32>
    %cst_15 = arith.constant 0.000000e+00 : f32
    %31 = vector.broadcast %cst_15 : f32 to vector<32x512xf32>
    %32 = arith.maximumf %30, %31 : vector<32x512xf32>
    %c0_16 = arith.constant 0 : index
    %c0_17 = arith.constant 0 : index
    %33 = vector.load %arg6[%c0_16, %c0_17] : memref<32x32xbf16, #tpu.memory_space<vmem>>, vector<32x32xbf16>
    %34 = arith.truncf %32 : vector<32x512xf32> to vector<32x512xbf16>
    %cst_18 = arith.constant dense<0.000000e+00> : vector<32x512xf32>
    %35 = tpu.matmul %33, %34, %cst_18 {dimension_numbers = #tpu.dot_dimension_numbers<[1], [0], [0], [1], [0, 0, 1, 1], [], []>} : vector<32x32xbf16>, vector<32x512xbf16>, vector<32x512xf32> -> vector<32x512xf32>
    %cst_19 = arith.constant 0.176776692 : f32
    %36 = vector.broadcast %cst_19 : f32 to vector<32x512xf32>
    %37 = arith.mulf %36, %35 : vector<32x512xf32>
    %c0_20 = arith.constant 0 : index
    %c0_21 = arith.constant 0 : index
    %38 = vector.load %arg7[%c0_20, %c0_21] : memref<32x1xf32, #tpu.memory_space<vmem>>, vector<32x1xf32>
    %cst_22 = arith.constant 1.000000e-01 : f32
    %39 = vector.broadcast %cst_22 : f32 to vector<32x1xf32>
    %40 = arith.mulf %39, %38 : vector<32x1xf32>
    %41 = vector.broadcast %40 : vector<32x1xf32> to vector<32x512xf32>
    %42 = arith.addf %37, %41 : vector<32x512xf32>
    %cst_23 = arith.constant 0.000000e+00 : f32
    %43 = vector.broadcast %cst_23 : f32 to vector<32x512xf32>
    %44 = arith.maximumf %42, %43 : vector<32x512xf32>
    %c0_24 = arith.constant 0 : index
    %c0_25 = arith.constant 0 : index
    %45 = vector.load %arg8[%c0_24, %c0_25] : memref<32x1xf32, #tpu.memory_space<vmem>>, vector<32x1xf32>
    %46 = vector.broadcast %45 : vector<32x1xf32> to vector<32x512xf32>
    %47 = arith.mulf %46, %44 : vector<32x512xf32>
    %cst_26 = arith.constant dense<0.000000e+00> : vector<512xf32>
    %48 = vector.multi_reduction <add>, %47, %cst_26 [0] : vector<32x512xf32> to vector<512xf32>
    %49 = vector.shape_cast %48 : vector<512xf32> to vector<1x512xf32>
    %cst_27 = arith.constant 0.176776692 : f32
    %50 = vector.broadcast %cst_27 : f32 to vector<1x512xf32>
    %51 = arith.mulf %50, %49 : vector<1x512xf32>
    %c0_28 = arith.constant 0 : index
    %c0_29 = arith.constant 0 : index
    %52 = vector.load %arg9[%c0_28, %c0_29] : memref<1x1xf32, #tpu.memory_space<vmem>>, vector<1x1xf32>
    %cst_30 = arith.constant 1.000000e-01 : f32
    %53 = vector.broadcast %cst_30 : f32 to vector<1x1xf32>
    %54 = arith.mulf %53, %52 : vector<1x1xf32>
    %55 = vector.broadcast %54 : vector<1x1xf32> to vector<1x512xf32>
    %56 = arith.addf %51, %55 : vector<1x512xf32>
    %c0_31 = arith.constant 0 : index
    %c0_32 = arith.constant 0 : index
    %57 = vector.load %arg10[%c0_31, %c0_32] : memref<1x512xf32, #tpu.memory_space<vmem>>, vector<1x512xf32>
    tpu.vector_store %arg10[%c0_31, %c0_32], %56 {strides = array<i32>} : memref<1x512xf32, #tpu.memory_space<vmem>>, vector<1x512xf32>,
    return
  }
  func.func @transform_0(%arg0: i32) -> (i32, i32) {
    %c0_i32 = arith.constant 0 : i32
    %c0_i32_0 = arith.constant 0 : i32
    return %c0_i32, %arg0 : i32, i32
  }
  func.func @transform_1(%arg0: i32) -> (i32, i32) {
    %c0_i32 = arith.constant 0 : i32
    %c0_i32_0 = arith.constant 0 : i32
    %c0_i32_1 = arith.constant 0 : i32
    return %c0_i32, %c0_i32_0 : i32, i32
  }
  func.func @transform_2(%arg0: i32) -> (i32, i32) {
    %c0_i32 = arith.constant 0 : i32
    %c0_i32_0 = arith.constant 0 : i32
    %c0_i32_1 = arith.constant 0 : i32
    return %c0_i32, %c0_i32_0 : i32, i32
  }
  func.func @transform_3(%arg0: i32) -> (i32, i32) {
    %c0_i32 = arith.constant 0 : i32
    %c0_i32_0 = arith.constant 0 : i32
    %c0_i32_1 = arith.constant 0 : i32
    return %c0_i32, %c0_i32_0 : i32, i32
  }
  func.func @transform_4(%arg0: i32) -> (i32, i32) {
    %c0_i32 = arith.constant 0 : i32
    %c0_i32_0 = arith.constant 0 : i32
    %c0_i32_1 = arith.constant 0 : i32
    return %c0_i32, %c0_i32_0 : i32, i32
  }
  func.func @transform_5(%arg0: i32) -> (i32, i32) {
    %c0_i32 = arith.constant 0 : i32
    %c0_i32_0 = arith.constant 0 : i32
    %c0_i32_1 = arith.constant 0 : i32
    return %c0_i32, %c0_i32_0 : i32, i32
  }
  func.func @transform_6(%arg0: i32) -> (i32, i32) {
    %c0_i32 = arith.constant 0 : i32
    %c0_i32_0 = arith.constant 0 : i32
    %c0_i32_1 = arith.constant 0 : i32
    return %c0_i32, %c0_i32_0 : i32, i32
  }
  func.func @transform_7(%arg0: i32) -> (i32, i32) {
    %c0_i32 = arith.constant 0 : i32
    %c0_i32_0 = arith.constant 0 : i32
    %c0_i32_1 = arith.constant 0 : i32
    return %c0_i32, %c0_i32_0 : i32, i32
  }
  func.func @transform_8(%arg0: i32) -> (i32, i32) {
    %c0_i32 = arith.constant 0 : i32
    %c0_i32_0 = arith.constant 0 : i32
    %c0_i32_1 = arith.constant 0 : i32
    return %c0_i32, %c0_i32_0 : i32, i32
  }
  func.func @transform_9(%arg0: i32) -> (i32, i32) {
    %c0_i32 = arith.constant 0 : i32
    %c0_i32_0 = arith.constant 0 : i32
    return %c0_i32, %arg0 : i32, i32
  }
}

</mosaic_0001>

<llo_original>
// kernel: tpu_custom_call.1
$region0: #{tpu_custom_call.1}
  #allocation0 [shape = 'u32[]', space=smem, size = 0x4, offset = 0x4, fixed_abs, tag = 'smem constant byte address 0x4 - core index']
  #allocation1 [shape = 'u32[144,128]{1,0:T(1,128)}', space=vmem, size = 0x12000, scoped, tag = 'internal scratch']
  #allocation2 [shape = 'f32[1,1]{1,0:T(1,128)S(1)}', space=vmem, size = 0x200, scoped, tag = 'scoped memory for tpu_custom_call.1']
  %s0 = inlined_call_operand.vmem [shape: f32[2,512], index: 0, kind: input, shape index: {}]
  %s1 = inlined_call_operand.vmem [shape: f32[32,2], index: 1, kind: input, shape index: {}]
  %s2 = inlined_call_operand.vmem [shape: f32[32,1], index: 2, kind: input, shape index: {}]
  %s3 = inlined_call_operand.vmem [shape: bf16[32,32], index: 3, kind: input, shape index: {}]
  %s4 = inlined_call_operand.vmem [shape: f32[32,1], index: 4, kind: input, shape index: {}]
  %s5 = inlined_call_operand.vmem [shape: bf16[32,32], index: 5, kind: input, shape index: {}]
  %s6 = inlined_call_operand.vmem [shape: f32[32,1], index: 6, kind: input, shape index: {}]
  %s7 = inlined_call_operand.vmem [shape: f32[32,1], index: 7, kind: input, shape index: {}]
  %s8 = inlined_call_operand.<no memory space> [shape: f32[1,1], index: 8, kind: input, shape index: {}]
  %s9 = inlined_call_operand.hbm [shape: f32[1,512], index: 9, kind: output, shape index: {}]
  %s10 = sld [smem:[#allocation0]]
  $region46: #{tpu_custom_call.1} parent=0
    _
  %s12 = ssub.s32 1, %s10
  %s13 = scalar_select 0, %s12, %s10
  %v14 = vstv %s8
  %15 = vst [vmem:[#allocation2] sm:$0x1] %v14
  $region1: #{tpu_custom_call.1} parent=0
    #allocation3 [shape = 'u8[2048]{0}', space=vmem, size = 0x800, scoped, tag = 'output window, operand 0, single buffered']
    #allocation4 [shape = 's32[1]{0}', space=sflag, size = 0x4, scoped, tag = 'scoped memory for tpu_custom_call.1']
    %16 = vsyncpa [#allocation4], 0
    // Predicated region
    $region2: #{tpu_custom_call.1} parent=1 // pred_check
      _
    $region3: #{tpu_custom_call.1} parent=1 // pred_check_branch
      %18 = sbr.rel (0) target = $region5
    $region4: #{tpu_custom_call.1} parent=1 // pred_region
      _
    $region5: #{tpu_custom_call.1} parent=1 // pred_fallthru
      _
    // Predicated region
    $region6: #{tpu_custom_call.1} parent=1 // pred_check
      _
    $region7: #{tpu_custom_call.1} parent=1 // pred_check_branch
      %20 = sbr.rel (0) target = $region9
    $region8: #{tpu_custom_call.1} parent=1 // pred_region
      _
    $region9: #{tpu_custom_call.1} parent=1 // pred_fallthru
      _
    // Predicated region
    $region10: #{tpu_custom_call.1} parent=1 // pred_check
      _
    $region11: #{tpu_custom_call.1} parent=1 // pred_check_branch
      %22 = sbr.rel (0) target = $region13
    $region12: #{tpu_custom_call.1} parent=1 // pred_region
      _
    $region13: #{tpu_custom_call.1} parent=1 // pred_fallthru
      _
    // Predicated region
    $region14: #{tpu_custom_call.1} parent=1 // pred_check
      _
    $region15: #{tpu_custom_call.1} parent=1 // pred_check_branch
      %24 = sbr.rel (0) target = $region17
    $region16: #{tpu_custom_call.1} parent=1 // pred_region
      _
    $region17: #{tpu_custom_call.1} parent=1 // pred_fallthru
      _
    // Predicated region
    $region18: #{tpu_custom_call.1} parent=1 // pred_check
      _
    $region19: #{tpu_custom_call.1} parent=1 // pred_check_branch
      %26 = sbr.rel (0) target = $region21
    $region20: #{tpu_custom_call.1} parent=1 // pred_region
      _
    $region21: #{tpu_custom_call.1} parent=1 // pred_fallthru
      _
    // Predicated region
    $region22: #{tpu_custom_call.1} parent=1 // pred_check
      _
    $region23: #{tpu_custom_call.1} parent=1 // pred_check_branch
      %28 = sbr.rel (0) target = $region25
    $region24: #{tpu_custom_call.1} parent=1 // pred_region
      _
    $region25: #{tpu_custom_call.1} parent=1 // pred_fallthru
      _
    // Predicated region
    $region26: #{tpu_custom_call.1} parent=1 // pred_check
      _
    $region27: #{tpu_custom_call.1} parent=1 // pred_check_branch
      %30 = sbr.rel (0) target = $region29
    $region28: #{tpu_custom_call.1} parent=1 // pred_region
      _
    $region29: #{tpu_custom_call.1} parent=1 // pred_fallthru
      _
    // Predicated region
    $region30: #{tpu_custom_call.1} parent=1 // pred_check
      _
    $region31: #{tpu_custom_call.1} parent=1 // pred_check_branch
      %32 = sbr.rel (0) target = $region33
    $region32: #{tpu_custom_call.1} parent=1 // pred_region
      _
    $region33: #{tpu_custom_call.1} parent=1 // pred_fallthru
      _
    // Predicated region
    $region34: #{tpu_custom_call.1} parent=1 // pred_check
      _
    $region35: #{tpu_custom_call.1} parent=1 // pred_check_branch
      %34 = sbr.rel (0) target = $region37
    $region36: #{tpu_custom_call.1} parent=1 // pred_region
      _
    $region37: #{tpu_custom_call.1} parent=1 // pred_fallthru
      _
    %v36 = vld [vmem:[%s0] sm:$0xff]
    %v37 = vld [vmem:[%s1] sm:$0xff]
    %v38 = vld [vmem:[%s1 + $0x8] sm:$0xff]
    %v39 = vld [vmem:[%s1 + $0x10] sm:$0xff]
    %v40 = vld [vmem:[%s1 + $0x18] sm:$0xff]
    %42 = vset.pattern.permute.xlu0 0
    %43 = vperm.xlu0 %42, %v37
    %v44 = vpop.permute.xlu0 %43
    %47 = vset.pattern.permute.xlu0 0
    %48 = vperm.xlu0 %47, %v38
    %v49 = vpop.permute.xlu0 %48
    %52 = vset.pattern.permute.xlu0 0
    %53 = vperm.xlu0 %52, %v39
    %v54 = vpop.permute.xlu0 %53
    %57 = vset.pattern.permute.xlu0 0
    %58 = vperm.xlu0 %57, %v40
    %v59 = vpop.permute.xlu0 %58
    %v62 = vlaneseq
    %v63 = vshrl.u32 %v62, 7
    %v64 = vsub.s32 0, %v63
    %v65 = vrot.slane %v36, %v64
    %v66 = vlaneseq
    %v67 = vshrl.u32 %v66, 7
    %v68 = vsub.s32 2, %v67
    %v69 = vrot.slane %v36, %v68
    %v70 = vlaneseq
    %v71 = vshrl.u32 %v70, 7
    %v72 = vsub.s32 4, %v71
    %v73 = vrot.slane %v36, %v72
    %v74 = vlaneseq
    %v75 = vshrl.u32 %v74, 7
    %v76 = vsub.s32 6, %v75
    %v77 = vrot.slane %v36, %v76
    %v82 = vlaneseq
    %v83 = vshrl.u32 %v82, 7
    %v84 = vsub.s32 0, %v83
    %v85 = vrot.slane %v65, %v84
    %v86 = vlaneseq
    %v87 = vshrl.u32 %v86, 7
    %v88 = vsub.s32 0, %v87
    %v89 = vrot.slane %v69, %v88
    %v90 = vlaneseq
    %v91 = vshrl.u32 %v90, 7
    %v92 = vsub.s32 0, %v91
    %v93 = vrot.slane %v73, %v92
    %v94 = vlaneseq
    %v95 = vshrl.u32 %v94, 7
    %v96 = vsub.s32 0, %v95
    %v97 = vrot.slane %v77, %v96
    %v98 = vmul.f32 %v44, %v85
    %v99 = vmul.f32 %v44, %v89
    %v100 = vmul.f32 %v44, %v93
    %v101 = vmul.f32 %v44, %v97
    %v102 = vmul.f32 %v49, %v85
    %v103 = vmul.f32 %v49, %v89
    %v104 = vmul.f32 %v49, %v93
    %v105 = vmul.f32 %v49, %v97
    %v106 = vmul.f32 %v54, %v85
    %v107 = vmul.f32 %v54, %v89
    %v108 = vmul.f32 %v54, %v93
    %v109 = vmul.f32 %v54, %v97
    %v110 = vmul.f32 %v59, %v85
    %v111 = vmul.f32 %v59, %v89
    %v112 = vmul.f32 %v59, %v93
    %v113 = vmul.f32 %v59, %v97
    %114 = vset.pattern.permute.xlu0 1
    %115 = vperm.xlu0 %114, %v37
    %v116 = vpop.permute.xlu0 %115
    %118 = vset.pattern.permute.xlu0 1
    %119 = vperm.xlu0 %118, %v38
    %v120 = vpop.permute.xlu0 %119
    %122 = vset.pattern.permute.xlu0 1
    %123 = vperm.xlu0 %122, %v39
    %v124 = vpop.permute.xlu0 %123
    %126 = vset.pattern.permute.xlu0 1
    %127 = vperm.xlu0 %126, %v40
    %v128 = vpop.permute.xlu0 %127
    %v130 = vlaneseq
    %v131 = vshrl.u32 %v130, 7
    %v132 = vsub.s32 1, %v131
    %v133 = vrot.slane %v36, %v132
    %v134 = vlaneseq
    %v135 = vshrl.u32 %v134, 7
    %v136 = vsub.s32 3, %v135
    %v137 = vrot.slane %v36, %v136
    %v138 = vlaneseq
    %v139 = vshrl.u32 %v138, 7
    %v140 = vsub.s32 5, %v139
    %v141 = vrot.slane %v36, %v140
    %v142 = vlaneseq
    %v143 = vshrl.u32 %v142, 7
    %v144 = vsub.s32 7, %v143
    %v145 = vrot.slane %v36, %v144
    %v150 = vlaneseq
    %v151 = vshrl.u32 %v150, 7
    %v152 = vsub.s32 1, %v151
    %v153 = vrot.slane %v133, %v152
    %v154 = vlaneseq
    %v155 = vshrl.u32 %v154, 7
    %v156 = vsub.s32 1, %v155
    %v157 = vrot.slane %v137, %v156
    %v158 = vlaneseq
    %v159 = vshrl.u32 %v158, 7
    %v160 = vsub.s32 1, %v159
    %v161 = vrot.slane %v141, %v160
    %v162 = vlaneseq
    %v163 = vshrl.u32 %v162, 7
    %v164 = vsub.s32 1, %v163
    %v165 = vrot.slane %v145, %v164
    %v166 = vmul.f32 %v116, %v153
    %v167 = vmul.f32 %v116, %v157
    %v168 = vmul.f32 %v116, %v161
    %v169 = vmul.f32 %v116, %v165
    %v170 = vmul.f32 %v120, %v153
    %v171 = vmul.f32 %v120, %v157
    %v172 = vmul.f32 %v120, %v161
    %v173 = vmul.f32 %v120, %v165
    %v174 = vmul.f32 %v124, %v153
    %v175 = vmul.f32 %v124, %v157
    %v176 = vmul.f32 %v124, %v161
    %v177 = vmul.f32 %v124, %v165
    %v178 = vmul.f32 %v128, %v153
    %v179 = vmul.f32 %v128, %v157
    %v180 = vmul.f32 %v128, %v161
    %v181 = vmul.f32 %v128, %v165
    %v182 = vadd.f32 %v98, %v166
    %v183 = vadd.f32 %v99, %v167
    %v184 = vadd.f32 %v100, %v168
    %v185 = vadd.f32 %v101, %v169
    %v186 = vadd.f32 %v102, %v170
    %v187 = vadd.f32 %v103, %v171
    %v188 = vadd.f32 %v104, %v172
    %v189 = vadd.f32 %v105, %v173
    %v190 = vadd.f32 %v106, %v174
    %v191 = vadd.f32 %v107, %v175
    %v192 = vadd.f32 %v108, %v176
    %v193 = vadd.f32 %v109, %v177
    %v194 = vadd.f32 %v110, %v178
    %v195 = vadd.f32 %v111, %v179
    %v196 = vadd.f32 %v112, %v180
    %v197 = vadd.f32 %v113, %v181
    %v198 = vmul.f32 %v182, 0.70710677
    %v199 = vmul.f32 %v183, 0.70710677
    %v200 = vmul.f32 %v184, 0.70710677
    %v201 = vmul.f32 %v185, 0.70710677
    %v202 = vmul.f32 %v186, 0.70710677
    %v203 = vmul.f32 %v187, 0.70710677
    %v204 = vmul.f32 %v188, 0.70710677
    %v205 = vmul.f32 %v189, 0.70710677
    %v206 = vmul.f32 %v190, 0.70710677
    %v207 = vmul.f32 %v191, 0.70710677
    %v208 = vmul.f32 %v192, 0.70710677
    %v209 = vmul.f32 %v193, 0.70710677
    %v210 = vmul.f32 %v194, 0.70710677
    %v211 = vmul.f32 %v195, 0.70710677
    %v212 = vmul.f32 %v196, 0.70710677
    %v213 = vmul.f32 %v197, 0.70710677
    %v214 = vld [vmem:[%s2] sm:$0xff]
    %v215 = vld [vmem:[%s2 + $0x8] sm:$0xff]
    %v216 = vld [vmem:[%s2 + $0x10] sm:$0xff]
    %v217 = vld [vmem:[%s2 + $0x18] sm:$0xff]
    %v218 = vmul.f32 %v214, 0.1
    %v219 = vmul.f32 %v215, 0.1
    %v220 = vmul.f32 %v216, 0.1
    %v221 = vmul.f32 %v217, 0.1
    %223 = vset.pattern.permute.xlu0 0
    %224 = vperm.xlu0 %223, %v218
    %v225 = vpop.permute.xlu0 %224
    %228 = vset.pattern.permute.xlu0 0
    %229 = vperm.xlu0 %228, %v219
    %v230 = vpop.permute.xlu0 %229
    %233 = vset.pattern.permute.xlu0 0
    %234 = vperm.xlu0 %233, %v220
    %v235 = vpop.permute.xlu0 %234
    %238 = vset.pattern.permute.xlu0 0
    %239 = vperm.xlu0 %238, %v221
    %v240 = vpop.permute.xlu0 %239
    %v242 = vadd.f32 %v198, %v225
    %v243 = vadd.f32 %v199, %v225
    %v244 = vadd.f32 %v200, %v225
    %v245 = vadd.f32 %v201, %v225
    %v246 = vadd.f32 %v202, %v230
    %v247 = vadd.f32 %v203, %v230
    %v248 = vadd.f32 %v204, %v230
    %v249 = vadd.f32 %v205, %v230
    %v250 = vadd.f32 %v206, %v235
    %v251 = vadd.f32 %v207, %v235
    %v252 = vadd.f32 %v208, %v235
    %v253 = vadd.f32 %v209, %v235
    %v254 = vadd.f32 %v210, %v240
    %v255 = vadd.f32 %v211, %v240
    %v256 = vadd.f32 %v212, %v240
    %v257 = vadd.f32 %v213, %v240
    %v258 = vmax.f32 %v242, 0.0
    %v259 = vmax.f32 %v243, 0.0
    %v260 = vmax.f32 %v244, 0.0
    %v261 = vmax.f32 %v245, 0.0
    %v262 = vmax.f32 %v246, 0.0
    %v263 = vmax.f32 %v247, 0.0
    %v264 = vmax.f32 %v248, 0.0
    %v265 = vmax.f32 %v249, 0.0
    %v266 = vmax.f32 %v250, 0.0
    %v267 = vmax.f32 %v251, 0.0
    %v268 = vmax.f32 %v252, 0.0
    %v269 = vmax.f32 %v253, 0.0
    %v270 = vmax.f32 %v254, 0.0
    %v271 = vmax.f32 %v255, 0.0
    %v272 = vmax.f32 %v256, 0.0
    %v273 = vmax.f32 %v257, 0.0
    %v274 = vld [vmem:[%s3] sm:$0xf]
    %v275 = vld [vmem:[%s3 + $0x4] sm:$0xf]
    %v276 = vld [vmem:[%s3 + $0x8] sm:$0xf]
    %v277 = vld [vmem:[%s3 + $0xc] sm:$0xf]
    %v278 = vpack.c.bf16 %v262, %v258
    %v279 = vpack.c.bf16 %v263, %v259
    %v280 = vpack.c.bf16 %v264, %v260
    %v281 = vpack.c.bf16 %v265, %v261
    %v282 = vpack.c.bf16 %v270, %v266
    %v283 = vpack.c.bf16 %v271, %v267
    %v284 = vpack.c.bf16 %v272, %v268
    %v285 = vpack.c.bf16 %v273, %v269
    %v290 = vunpack.c.l.b16 %v274
    %v291 = vunpack.c.l.b16 %v275
    %v292 = vunpack.c.l.b16 %v276
    %v293 = vunpack.c.l.b16 %v277
    %v294 = vpack.c.b16 %v291, %v290
    %v295 = vpack.c.b16 %v293, %v292
    %vm296 = vcmask 261120
    %v298 = vsel %vm296, %v294, 0
    %v301 = vsel %vm296, %v295, 0
    %303 = vmatprep.subr.bf16.mxu0 %v279
    %304 = vmatpush1.bf16.msra.mxu0 %v278
    %305 = vmatprep.subr.bf16.mxu0 %v283
    %306 = vmatpush1.bf16.msra.mxu0 %v282
    %307 = vmatprep.subr.bf16.mxu0 0
    %308 = vmatpush1.bf16.msra.mxu0 0
    %309 = vmatprep.subr.bf16.mxu0 0
    %310 = vmatpush1.bf16.msra.mxu0 0
    %311 = vmatprep.subr.bf16.mxu0 0
    %312 = vmatpush1.bf16.msra.mxu0 0
    %313 = vmatprep.subr.bf16.mxu0 0
    %314 = vmatpush1.bf16.msra.mxu0 0
    %315 = vmatprep.subr.bf16.mxu0 0
    %316 = vmatpush1.bf16.msra.mxu0 0
    %317 = vmatprep.subr.bf16.mxu0 0
    %318 = vmatpush1.bf16.msra.mxu0 0
    %319 = vmatprep.subr.bf16.mxu0 0
    %320 = vmatpush1.bf16.msra.mxu0 0
    %321 = vmatprep.subr.bf16.mxu0 0
    %322 = vmatpush1.bf16.msra.mxu0 0
    %323 = vmatprep.subr.bf16.mxu0 0
    %324 = vmatpush1.bf16.msra.mxu0 0
    %325 = vmatprep.subr.bf16.mxu0 0
    %326 = vmatpush1.bf16.msra.mxu0 0
    %327 = vmatprep.subr.bf16.mxu0 0
    %328 = vmatpush1.bf16.msra.mxu0 0
    %329 = vmatprep.subr.bf16.mxu0 0
    %330 = vmatpush1.bf16.msra.mxu0 0
    %331 = vmatprep.subr.bf16.mxu0 0
    %332 = vmatpush1.bf16.msra.mxu0 0
    %333 = vmatprep.subr.bf16.mxu0 0
    %334 = vmatpush1.bf16.msra.mxu0 0
    %335 = vmatprep.mubr.bf16.mxu0 0
    %336 = vmatmul.mubr.bf16.gmra.mrb[0].mxu0 %v298
    %v337 = vpop.f32.mrb[0].mxu0
    %v338 = vadd.f32 0.0, %v337
    %v339 = vpop.f32.mrb[0].mxu0
    %v340 = vadd.f32 0.0, %v339
    %v341 = vpop.f32.mrb[0].mxu0
    %v342 = vadd.f32 0.0, %v341
    %v343 = vpop.f32.mrb[0].mxu0
    %v344 = vadd.f32 0.0, %v343
    %345 = vmatprep.mubr.bf16.mxu0 0
    %346 = vmatmul.mubr.bf16.gmra.mrb[0].mxu0 %v301
    %v347 = vpop.f32.mrb[0].mxu0
    %v348 = vadd.f32 0.0, %v347
    %v349 = vpop.f32.mrb[0].mxu0
    %v350 = vadd.f32 0.0, %v349
    %v351 = vpop.f32.mrb[0].mxu0
    %v352 = vadd.f32 0.0, %v351
    %v353 = vpop.f32.mrb[0].mxu0
    %v354 = vadd.f32 0.0, %v353
    %355 = vdwg.mxu0
    %356 = vmatprep.subr.bf16.mxu0 %v281
    %357 = vmatpush1.bf16.msra.mxu0 %v280
    %358 = vmatprep.subr.bf16.mxu0 %v285
    %359 = vmatpush1.bf16.msra.mxu0 %v284
    %360 = vmatprep.subr.bf16.mxu0 0
    %361 = vmatpush1.bf16.msra.mxu0 0
    %362 = vmatprep.subr.bf16.mxu0 0
    %363 = vmatpush1.bf16.msra.mxu0 0
    %364 = vmatprep.subr.bf16.mxu0 0
    %365 = vmatpush1.bf16.msra.mxu0 0
    %366 = vmatprep.subr.bf16.mxu0 0
    %367 = vmatpush1.bf16.msra.mxu0 0
    %368 = vmatprep.subr.bf16.mxu0 0
    %369 = vmatpush1.bf16.msra.mxu0 0
    %370 = vmatprep.subr.bf16.mxu0 0
    %371 = vmatpush1.bf16.msra.mxu0 0
    %372 = vmatprep.subr.bf16.mxu0 0
    %373 = vmatpush1.bf16.msra.mxu0 0
    %374 = vmatprep.subr.bf16.mxu0 0
    %375 = vmatpush1.bf16.msra.mxu0 0
    %376 = vmatprep.subr.bf16.mxu0 0
    %377 = vmatpush1.bf16.msra.mxu0 0
    %378 = vmatprep.subr.bf16.mxu0 0
    %379 = vmatpush1.bf16.msra.mxu0 0
    %380 = vmatprep.subr.bf16.mxu0 0
    %381 = vmatpush1.bf16.msra.mxu0 0
    %382 = vmatprep.subr.bf16.mxu0 0
    %383 = vmatpush1.bf16.msra.mxu0 0
    %384 = vmatprep.subr.bf16.mxu0 0
    %385 = vmatpush1.bf16.msra.mxu0 0
    %386 = vmatprep.subr.bf16.mxu0 0
    %387 = vmatpush1.bf16.msra.mxu0 0
    %388 = vmatprep.mubr.bf16.mxu0 0
    %389 = vmatmul.mubr.bf16.gmra.mrb[0].mxu0 %v298
    %v390 = vpop.f32.mrb[0].mxu0
    %v391 = vadd.f32 0.0, %v390
    %v392 = vpop.f32.mrb[0].mxu0
    %v393 = vadd.f32 0.0, %v392
    %v394 = vpop.f32.mrb[0].mxu0
    %v395 = vadd.f32 0.0, %v394
    %v396 = vpop.f32.mrb[0].mxu0
    %v397 = vadd.f32 0.0, %v396
    %398 = vmatprep.mubr.bf16.mxu0 0
    %399 = vmatmul.mubr.bf16.gmra.mrb[0].mxu0 %v301
    %v400 = vpop.f32.mrb[0].mxu0
    %v401 = vadd.f32 0.0, %v400
    %v402 = vpop.f32.mrb[0].mxu0
    %v403 = vadd.f32 0.0, %v402
    %v404 = vpop.f32.mrb[0].mxu0
    %v405 = vadd.f32 0.0, %v404
    %v406 = vpop.f32.mrb[0].mxu0
    %v407 = vadd.f32 0.0, %v406
    %408 = vdwg.mxu0
    %v409 = vmul.f32 %v338, 0.17677669
    %v410 = vmul.f32 %v340, 0.17677669
    %v411 = vmul.f32 %v391, 0.17677669
    %v412 = vmul.f32 %v393, 0.17677669
    %v413 = vmul.f32 %v342, 0.17677669
    %v414 = vmul.f32 %v344, 0.17677669
    %v415 = vmul.f32 %v395, 0.17677669
    %v416 = vmul.f32 %v397, 0.17677669
    %v417 = vmul.f32 %v348, 0.17677669
    %v418 = vmul.f32 %v350, 0.17677669
    %v419 = vmul.f32 %v401, 0.17677669
    %v420 = vmul.f32 %v403, 0.17677669
    %v421 = vmul.f32 %v352, 0.17677669
    %v422 = vmul.f32 %v354, 0.17677669
    %v423 = vmul.f32 %v405, 0.17677669
    %v424 = vmul.f32 %v407, 0.17677669
    %v425 = vld [vmem:[%s4] sm:$0xff]
    %v426 = vld [vmem:[%s4 + $0x8] sm:$0xff]
    %v427 = vld [vmem:[%s4 + $0x10] sm:$0xff]
    %v428 = vld [vmem:[%s4 + $0x18] sm:$0xff]
    %v429 = vmul.f32 %v425, 0.1
    %v430 = vmul.f32 %v426, 0.1
    %v431 = vmul.f32 %v427, 0.1
    %v432 = vmul.f32 %v428, 0.1
    %434 = vset.pattern.permute.xlu0 0
    %435 = vperm.xlu0 %434, %v429
    %v436 = vpop.permute.xlu0 %435
    %439 = vset.pattern.permute.xlu0 0
    %440 = vperm.xlu0 %439, %v430
    %v441 = vpop.permute.xlu0 %440
    %444 = vset.pattern.permute.xlu0 0
    %445 = vperm.xlu0 %444, %v431
    %v446 = vpop.permute.xlu0 %445
    %449 = vset.pattern.permute.xlu0 0
    %450 = vperm.xlu0 %449, %v432
    %v451 = vpop.permute.xlu0 %450
    %v453 = vadd.f32 %v409, %v436
    %v454 = vadd.f32 %v410, %v436
    %v455 = vadd.f32 %v411, %v436
    %v456 = vadd.f32 %v412, %v436
    %v457 = vadd.f32 %v413, %v441
    %v458 = vadd.f32 %v414, %v441
    %v459 = vadd.f32 %v415, %v441
    %v460 = vadd.f32 %v416, %v441
    %v461 = vadd.f32 %v417, %v446
    %v462 = vadd.f32 %v418, %v446
    %v463 = vadd.f32 %v419, %v446
    %v464 = vadd.f32 %v420, %v446
    %v465 = vadd.f32 %v421, %v451
    %v466 = vadd.f32 %v422, %v451
    %v467 = vadd.f32 %v423, %v451
    %v468 = vadd.f32 %v424, %v451
    %v469 = vmax.f32 %v453, 0.0
    %v470 = vmax.f32 %v454, 0.0
    %v471 = vmax.f32 %v455, 0.0
    %v472 = vmax.f32 %v456, 0.0
    %v473 = vmax.f32 %v457, 0.0
    %v474 = vmax.f32 %v458, 0.0
    %v475 = vmax.f32 %v459, 0.0
    %v476 = vmax.f32 %v460, 0.0
    %v477 = vmax.f32 %v461, 0.0
    %v478 = vmax.f32 %v462, 0.0
    %v479 = vmax.f32 %v463, 0.0
    %v480 = vmax.f32 %v464, 0.0
    %v481 = vmax.f32 %v465, 0.0
    %v482 = vmax.f32 %v466, 0.0
    %v483 = vmax.f32 %v467, 0.0
    %v484 = vmax.f32 %v468, 0.0
    %v485 = vld [vmem:[%s5] sm:$0xf]
    %v486 = vld [vmem:[%s5 + $0x4] sm:$0xf]
    %v487 = vld [vmem:[%s5 + $0x8] sm:$0xf]
    %v488 = vld [vmem:[%s5 + $0xc] sm:$0xf]
    %v489 = vpack.c.bf16 %v473, %v469
    %v490 = vpack.c.bf16 %v474, %v470
    %v491 = vpack.c.bf16 %v475, %v471
    %v492 = vpack.c.bf16 %v476, %v472
    %v493 = vpack.c.bf16 %v481, %v477
    %v494 = vpack.c.bf16 %v482, %v478
    %v495 = vpack.c.bf16 %v483, %v479
    %v496 = vpack.c.bf16 %v484, %v480
    %v501 = vunpack.c.l.b16 %v485
    %v502 = vunpack.c.l.b16 %v486
    %v503 = vunpack.c.l.b16 %v487
    %v504 = vunpack.c.l.b16 %v488
    %v505 = vpack.c.b16 %v502, %v501
    %v506 = vpack.c.b16 %v504, %v503
    %v508 = vsel %vm296, %v505, 0
    %v511 = vsel %vm296, %v506, 0
    %513 = vmatprep.subr.bf16.mxu0 %v490
    %514 = vmatpush1.bf16.msra.mxu0 %v489
    %515 = vmatprep.subr.bf16.mxu0 %v494
    %516 = vmatpush1.bf16.msra.mxu0 %v493
    %517 = vmatprep.subr.bf16.mxu0 0
    %518 = vmatpush1.bf16.msra.mxu0 0
    %519 = vmatprep.subr.bf16.mxu0 0
    %520 = vmatpush1.bf16.msra.mxu0 0
    %521 = vmatprep.subr.bf16.mxu0 0
    %522 = vmatpush1.bf16.msra.mxu0 0
    %523 = vmatprep.subr.bf16.mxu0 0
    %524 = vmatpush1.bf16.msra.mxu0 0
    %525 = vmatprep.subr.bf16.mxu0 0
    %526 = vmatpush1.bf16.msra.mxu0 0
    %527 = vmatprep.subr.bf16.mxu0 0
    %528 = vmatpush1.bf16.msra.mxu0 0
    %529 = vmatprep.subr.bf16.mxu0 0
    %530 = vmatpush1.bf16.msra.mxu0 0
    %531 = vmatprep.subr.bf16.mxu0 0
    %532 = vmatpush1.bf16.msra.mxu0 0
    %533 = vmatprep.subr.bf16.mxu0 0
    %534 = vmatpush1.bf16.msra.mxu0 0
    %535 = vmatprep.subr.bf16.mxu0 0
    %536 = vmatpush1.bf16.msra.mxu0 0
    %537 = vmatprep.subr.bf16.mxu0 0
    %538 = vmatpush1.bf16.msra.mxu0 0
    %539 = vmatprep.subr.bf16.mxu0 0
    %540 = vmatpush1.bf16.msra.mxu0 0
    %541 = vmatprep.subr.bf16.mxu0 0
    %542 = vmatpush1.bf16.msra.mxu0 0
    %543 = vmatprep.subr.bf16.mxu0 0
    %544 = vmatpush1.bf16.msra.mxu0 0
    %545 = vmatprep.mubr.bf16.mxu0 0
    %546 = vmatmul.mubr.bf16.gmra.mrb[0].mxu0 %v508
    %v547 = vpop.f32.mrb[0].mxu0
    %v548 = vadd.f32 0.0, %v547
    %v549 = vpop.f32.mrb[0].mxu0
    %v550 = vadd.f32 0.0, %v549
    %v551 = vpop.f32.mrb[0].mxu0
    %v552 = vadd.f32 0.0, %v551
    %v553 = vpop.f32.mrb[0].mxu0
    %v554 = vadd.f32 0.0, %v553
    %555 = vmatprep.mubr.bf16.mxu0 0
    %556 = vmatmul.mubr.bf16.gmra.mrb[0].mxu0 %v511
    %v557 = vpop.f32.mrb[0].mxu0
    %v558 = vadd.f32 0.0, %v557
    %v559 = vpop.f32.mrb[0].mxu0
    %v560 = vadd.f32 0.0, %v559
    %v561 = vpop.f32.mrb[0].mxu0
    %v562 = vadd.f32 0.0, %v561
    %v563 = vpop.f32.mrb[0].mxu0
    %v564 = vadd.f32 0.0, %v563
    %565 = vdwg.mxu0
    %566 = vmatprep.subr.bf16.mxu0 %v492
    %567 = vmatpush1.bf16.msra.mxu0 %v491
    %568 = vmatprep.subr.bf16.mxu0 %v496
    %569 = vmatpush1.bf16.msra.mxu0 %v495
    %570 = vmatprep.subr.bf16.mxu0 0
    %571 = vmatpush1.bf16.msra.mxu0 0
    %572 = vmatprep.subr.bf16.mxu0 0
    %573 = vmatpush1.bf16.msra.mxu0 0
    %574 = vmatprep.subr.bf16.mxu0 0
    %575 = vmatpush1.bf16.msra.mxu0 0
    %576 = vmatprep.subr.bf16.mxu0 0
    %577 = vmatpush1.bf16.msra.mxu0 0
    %578 = vmatprep.subr.bf16.mxu0 0
    %579 = vmatpush1.bf16.msra.mxu0 0
    %580 = vmatprep.subr.bf16.mxu0 0
    %581 = vmatpush1.bf16.msra.mxu0 0
    %582 = vmatprep.subr.bf16.mxu0 0
    %583 = vmatpush1.bf16.msra.mxu0 0
    %584 = vmatprep.subr.bf16.mxu0 0
    %585 = vmatpush1.bf16.msra.mxu0 0
    %586 = vmatprep.subr.bf16.mxu0 0
    %587 = vmatpush1.bf16.msra.mxu0 0
    %588 = vmatprep.subr.bf16.mxu0 0
    %589 = vmatpush1.bf16.msra.mxu0 0
    %590 = vmatprep.subr.bf16.mxu0 0
    %591 = vmatpush1.bf16.msra.mxu0 0
    %592 = vmatprep.subr.bf16.mxu0 0
    %593 = vmatpush1.bf16.msra.mxu0 0
    %594 = vmatprep.subr.bf16.mxu0 0
    %595 = vmatpush1.bf16.msra.mxu0 0
    %596 = vmatprep.subr.bf16.mxu0 0
    %597 = vmatpush1.bf16.msra.mxu0 0
    %598 = vmatprep.mubr.bf16.mxu0 0
    %599 = vmatmul.mubr.bf16.gmra.mrb[0].mxu0 %v508
    %v600 = vpop.f32.mrb[0].mxu0
    %v601 = vadd.f32 0.0, %v600
    %v602 = vpop.f32.mrb[0].mxu0
    %v603 = vadd.f32 0.0, %v602
    %v604 = vpop.f32.mrb[0].mxu0
    %v605 = vadd.f32 0.0, %v604
    %v606 = vpop.f32.mrb[0].mxu0
    %v607 = vadd.f32 0.0, %v606
    %608 = vmatprep.mubr.bf16.mxu0 0
    %609 = vmatmul.mubr.bf16.gmra.mrb[0].mxu0 %v511
    %v610 = vpop.f32.mrb[0].mxu0
    %v611 = vadd.f32 0.0, %v610
    %v612 = vpop.f32.mrb[0].mxu0
    %v613 = vadd.f32 0.0, %v612
    %v614 = vpop.f32.mrb[0].mxu0
    %v615 = vadd.f32 0.0, %v614
    %v616 = vpop.f32.mrb[0].mxu0
    %v617 = vadd.f32 0.0, %v616
    %618 = vdwg.mxu0
    %v619 = vmul.f32 %v548, 0.17677669
    %v620 = vmul.f32 %v550, 0.17677669
    %v621 = vmul.f32 %v601, 0.17677669
    %v622 = vmul.f32 %v603, 0.17677669
    %v623 = vmul.f32 %v552, 0.17677669
    %v624 = vmul.f32 %v554, 0.17677669
    %v625 = vmul.f32 %v605, 0.17677669
    %v626 = vmul.f32 %v607, 0.17677669
    %v627 = vmul.f32 %v558, 0.17677669
    %v628 = vmul.f32 %v560, 0.17677669
    %v629 = vmul.f32 %v611, 0.17677669
    %v630 = vmul.f32 %v613, 0.17677669
    %v631 = vmul.f32 %v562, 0.17677669
    %v632 = vmul.f32 %v564, 0.17677669
    %v633 = vmul.f32 %v615, 0.17677669
    %v634 = vmul.f32 %v617, 0.17677669
    %v635 = vld [vmem:[%s6] sm:$0xff]
    %v636 = vld [vmem:[%s6 + $0x8] sm:$0xff]
    %v637 = vld [vmem:[%s6 + $0x10] sm:$0xff]
    %v638 = vld [vmem:[%s6 + $0x18] sm:$0xff]
    %v639 = vmul.f32 %v635, 0.1
    %v640 = vmul.f32 %v636, 0.1
    %v641 = vmul.f32 %v637, 0.1
    %v642 = vmul.f32 %v638, 0.1
    %644 = vset.pattern.permute.xlu0 0
    %645 = vperm.xlu0 %644, %v639
    %v646 = vpop.permute.xlu0 %645
    %649 = vset.pattern.permute.xlu0 0
    %650 = vperm.xlu0 %649, %v640
    %v651 = vpop.permute.xlu0 %650
    %654 = vset.pattern.permute.xlu0 0
    %655 = vperm.xlu0 %654, %v641
    %v656 = vpop.permute.xlu0 %655
    %659 = vset.pattern.permute.xlu0 0
    %660 = vperm.xlu0 %659, %v642
    %v661 = vpop.permute.xlu0 %660
    %v663 = vadd.f32 %v619, %v646
    %v664 = vadd.f32 %v620, %v646
    %v665 = vadd.f32 %v621, %v646
    %v666 = vadd.f32 %v622, %v646
    %v667 = vadd.f32 %v623, %v651
    %v668 = vadd.f32 %v624, %v651
    %v669 = vadd.f32 %v625, %v651
    %v670 = vadd.f32 %v626, %v651
    %v671 = vadd.f32 %v627, %v656
    %v672 = vadd.f32 %v628, %v656
    %v673 = vadd.f32 %v629, %v656
    %v674 = vadd.f32 %v630, %v656
    %v675 = vadd.f32 %v631, %v661
    %v676 = vadd.f32 %v632, %v661
    %v677 = vadd.f32 %v633, %v661
    %v678 = vadd.f32 %v634, %v661
    %v679 = vmax.f32 %v663, 0.0
    %v680 = vmax.f32 %v664, 0.0
    %v681 = vmax.f32 %v665, 0.0
    %v682 = vmax.f32 %v666, 0.0
    %v683 = vmax.f32 %v667, 0.0
    %v684 = vmax.f32 %v668, 0.0
    %v685 = vmax.f32 %v669, 0.0
    %v686 = vmax.f32 %v670, 0.0
    %v687 = vmax.f32 %v671, 0.0
    %v688 = vmax.f32 %v672, 0.0
    %v689 = vmax.f32 %v673, 0.0
    %v690 = vmax.f32 %v674, 0.0
    %v691 = vmax.f32 %v675, 0.0
    %v692 = vmax.f32 %v676, 0.0
    %v693 = vmax.f32 %v677, 0.0
    %v694 = vmax.f32 %v678, 0.0
    %v695 = vld [vmem:[%s7] sm:$0xff]
    %v696 = vld [vmem:[%s7 + $0x8] sm:$0xff]
    %v697 = vld [vmem:[%s7 + $0x10] sm:$0xff]
    %v698 = vld [vmem:[%s7 + $0x18] sm:$0xff]
    %700 = vset.pattern.permute.xlu0 0
    %701 = vperm.xlu0 %700, %v695
    %v702 = vpop.permute.xlu0 %701
    %705 = vset.pattern.permute.xlu0 0
    %706 = vperm.xlu0 %705, %v696
    %v707 = vpop.permute.xlu0 %706
    %710 = vset.pattern.permute.xlu0 0
    %711 = vperm.xlu0 %710, %v697
    %v712 = vpop.permute.xlu0 %711
    %715 = vset.pattern.permute.xlu0 0
    %716 = vperm.xlu0 %715, %v698
    %v717 = vpop.permute.xlu0 %716
    %v719 = vmul.f32 %v702, %v679
    %v720 = vmul.f32 %v702, %v680
    %v721 = vmul.f32 %v702, %v681
    %v722 = vmul.f32 %v702, %v682
    %v723 = vmul.f32 %v707, %v683
    %v724 = vmul.f32 %v707, %v684
    %v725 = vmul.f32 %v707, %v685
    %v726 = vmul.f32 %v707, %v686
    %v727 = vmul.f32 %v712, %v687
    %v728 = vmul.f32 %v712, %v688
    %v729 = vmul.f32 %v712, %v689
    %v730 = vmul.f32 %v712, %v690
    %v731 = vmul.f32 %v717, %v691
    %v732 = vmul.f32 %v717, %v692
    %v733 = vmul.f32 %v717, %v693
    %v734 = vmul.f32 %v717, %v694
    %v735 = vadd.f32 %v719, %v723
    %v736 = vadd.f32 %v735, %v727
    %v737 = vadd.f32 %v736, %v731
    %v738 = vrot.slane %v737, 4
    %v739 = vadd.f32 %v737, %v738
    %v740 = vrot.slane %v739, 2
    %v741 = vadd.f32 %v739, %v740
    %v742 = vrot.slane %v741, 1
    %v743 = vadd.f32 %v741, %v742
    %v744 = vadd.f32 %v720, %v724
    %v745 = vadd.f32 %v744, %v728
    %v746 = vadd.f32 %v745, %v732
    %v747 = vrot.slane %v746, 4
    %v748 = vadd.f32 %v746, %v747
    %v749 = vrot.slane %v748, 2
    %v750 = vadd.f32 %v748, %v749
    %v751 = vrot.slane %v750, 1
    %v752 = vadd.f32 %v750, %v751
    %v753 = vadd.f32 %v721, %v725
    %v754 = vadd.f32 %v753, %v729
    %v755 = vadd.f32 %v754, %v733
    %v756 = vrot.slane %v755, 4
    %v757 = vadd.f32 %v755, %v756
    %v758 = vrot.slane %v757, 2
    %v759 = vadd.f32 %v757, %v758
    %v760 = vrot.slane %v759, 1
    %v761 = vadd.f32 %v759, %v760
    %v762 = vadd.f32 %v722, %v726
    %v763 = vadd.f32 %v762, %v730
    %v764 = vadd.f32 %v763, %v734
    %v765 = vrot.slane %v764, 4
    %v766 = vadd.f32 %v764, %v765
    %v767 = vrot.slane %v766, 2
    %v768 = vadd.f32 %v766, %v767
    %v769 = vrot.slane %v768, 1
    %v770 = vadd.f32 %v768, %v769
    %v771 = vmul.f32 %v743, 0.17677669
    %v772 = vmul.f32 %v752, 0.17677669
    %v773 = vmul.f32 %v761, 0.17677669
    %v774 = vmul.f32 %v770, 0.17677669
    %v775 = vld [vmem:[#allocation2] sm:$0x1]
    %v776 = vmul.f32 %v775, 0.1
    %778 = vset.pattern.permute.xlu0 0
    %779 = vperm.xlu0 %778, %v776
    %v780 = vpop.permute.xlu0 %779
    %v782 = vlaneseq
    %v783 = vshrl.u32 %v782, 7
    %v784 = vsub.s32 0, %v783
    %v785 = vrot.slane %v780, %v784
    %v786 = vadd.f32 %v771, %v785
    %v787 = vadd.f32 %v772, %v785
    %v788 = vadd.f32 %v773, %v785
    %v789 = vadd.f32 %v774, %v785
    %v794 = vcombine.low %v786, %v787
    %v795 = vcombine.low %v788, %v789
    %v797 = vunpack.c.l.s4 1966171168
    %v798 = vunpack.c.0.s8 %v797
    %v799 = vlaneseq
    %v800 = vshrl.u32 %v799, 7
    %v801 = vsub.s32 %v798, %v800
    %v802 = vrot.slane %v794, %v801
    %v804 = vunpack.c.l.s4 1966171168
    %v805 = vunpack.c.0.s8 %v804
    %v806 = vlaneseq
    %v807 = vshrl.u32 %v806, 7
    %v808 = vsub.s32 %v805, %v807
    %v809 = vrot.slane %v795, %v808
    %v810 = vcombine.low %v802, %v809
    %v812 = vunpack.c.l.s4 1966171168
    %v813 = vunpack.c.0.s8 %v812
    %v814 = vlaneseq
    %v815 = vshrl.u32 %v814, 7
    %v816 = vsub.s32 %v813, %v815
    %v817 = vrot.slane %v810, %v816
    %v819 = vlaneseq
    %vm820 = vcmp.ge.s32.totalorder %v819, 0
    %vm821 = vcmp.lt.s32.totalorder %v819, 512
    %vm822 = vmand %vm820, %vm821
    %823 = vst.msk [vmem:[#allocation3] sm:$0xf] %vm822, %v817
    // Predicated region
    $region38: #{tpu_custom_call.1} parent=1 // pred_check
      _
    $region39: #{tpu_custom_call.1} parent=1 // pred_check_branch
      %825 = sbr.rel (0) target = $region41
    $region40: #{tpu_custom_call.1} parent=1 // pred_region
      %s827 = ssub.s32 64, 64
      %828 = vsyncadd [#allocation4], %s827
      %s830 = sshll.u32 [#allocation3], 4
      %s831 = int_to_ptr.vmem [resolvable:$true] %s830
      %833 = dma.vmem_to_hbm [thread:$0]  %s831, 64, %s9, [#allocation4]
    $region41: #{tpu_custom_call.1} parent=1 // pred_fallthru
      _
    // Predicated region
    $region42: #{tpu_custom_call.1} parent=1 // pred_check
      _
    $region43: #{tpu_custom_call.1} parent=1 // pred_check_branch
      %835 = sbr.rel (0) target = $region45
    $region44: #{tpu_custom_call.1} parent=1 // pred_region
      %836 = dma.done [#allocation4], 64
    $region45: #{tpu_custom_call.1} parent=1 // pred_fallthru
      _
    %837 = vsyncpa [#allocation4], 1

</llo_original>
